<compile_context>
chip_gen: v5e
topology: v5e:2x2
jax: 0.10.0
libtpu: 0.0.40
codegen_flags: <defaults>
</compile_context>

<pallas_src>
import functools
import math

import jax
import jax.numpy as jnp
from jax.experimental import pallas as pl
from jax.experimental.pallas import tpu as pltpu


def _round_up(x, m):
    return ((x + m - 1) // m) * m


def _pick_tile_len(l_out, c_out_pad):
    """Largest 128-multiple tile <= needed length with a bounded f32 acc tile."""
    want = _round_up(max(l_out, 1), 128)
    for cand in (2048, 1024, 512, 256, 128):
        if cand <= want and c_out_pad * cand * 4 <= 128 * 1024:
            return cand
    return 128


def _conv_tile_kernel(w_ref, b_ref, x_ref, h_ref, o_ref, *, kernel_size,
                      dilation, tile_len):
    """One (batch, length-tile) grid step.

    w_ref: (C_out_pad, K*C_in)  im2col weight, row index = k*C_in + c
    b_ref: (C_out_pad, 1)       bias
    x_ref: (C_in, TL)           length block j of the zero-padded input
    h_ref: (C_in, HB)           narrow right-halo block starting at (j+1)*TL
    o_ref: (C_out_pad, TL)      output tile (lane-dense store)
    """
    tl = tile_len
    window = jnp.concatenate([x_ref[...], h_ref[...]], axis=1)   # (C_in, TL+HB)
    width = window.shape[1]

    cols = []
    for k in range(kernel_size):
        shift = k * dilation
        if shift == 0:
            shifted = window
        else:
            # Left-rotate by k*dilation on the XLU, then take the aligned
            # leading TL lanes (no unaligned lane slices per tap).
            shifted = pltpu.roll(window, shift=width - shift, axis=1)
        cols.append(shifted[:, :tl])
    im2col = jnp.concatenate(cols, axis=0)                       # (K*C_in, TL)

    acc = jnp.dot(w_ref[...], im2col, preferred_element_type=jnp.float32)
    o_ref[...] = acc + b_ref[...]                                # bias broadcast


def _build_gabor_weight(mean, std, freq, phase, weight, kernel_size):
    """Build the (C_out, C_in, K) conv kernel from the Gabor parameters."""
    K = kernel_size
    # Matches torch.linspace(-K // 2, K // 2, K)  (Python floor division).
    t = jnp.linspace(float((-K) // 2), float(K // 2), K,
                     dtype=jnp.float32).reshape(1, 1, K)
    mean_ = mean[:, :, None]
    std_ = jnp.exp(std)[:, :, None]
    freq_ = freq[:, :, None]
    phase_ = phase[:, :, None]
    gaussian = jnp.exp(-0.5 * ((t - mean_) / std_) ** 2)
    sinusoid = jnp.cos(2.0 * math.pi * freq_ * t + phase_)
    gabor = gaussian * sinusoid                                  # (C_out, N, K)
    # kernel[o, c, k] = sum_n weight[o, c, n] * gabor[o, n, k]
    return jnp.einsum('ocn,onk->ock', weight, gabor)             # (C_out, C_in, K)


def gabor_conv1d(x, mean, std, freq, phase, weight, bias, *, kernel_size,
                 stride=1, padding=0, dilation=1, groups=1):
    if stride != 1 or groups != 1:
        # TODO(synk): strided / grouped conv variants not implemented in the Pallas path.
        raise NotImplementedError("only stride=1, groups=1 supported")

    B, c_in, L = x.shape
    c_out = mean.shape[0]
    K = kernel_size
    halo = dilation * (K - 1)
    l_out = (L + 2 * padding - halo - 1) // stride + 1
    assert l_out > 0

    # ---- Gabor filter-bank build: tiny, plain JAX (fused by XLA) ------------
    kernel = _build_gabor_weight(mean, std, freq, phase, weight, K)
    c_out_pad = _round_up(c_out, 8)
    # lane-contiguous im2col weight, row index = k * C_in + c
    w2d = jnp.transpose(kernel, (0, 2, 1)).reshape(c_out, K * c_in)
    w2d = jnp.zeros((c_out_pad, K * c_in), jnp.float32).at[:c_out].set(w2d)
    b2 = jnp.zeros((c_out_pad, 1), jnp.float32).at[:c_out, 0].set(
        bias.astype(jnp.float32))

    # ---- length tiling -------------------------------------------------------
    # Halo block: power-of-two multiple of 128 >= halo, so it both divides TL
    # (TL is a power-of-two multiple of 128) and is lane-aligned.
    hb = 128 * pl.next_power_of_2(pl.cdiv(max(halo, 1), 128))
    tl = _pick_tile_len(l_out, c_out_pad)
    tl = max(tl, hb)                      # halo block fits next to one tile
    n_lt = pl.cdiv(l_out, tl)
    hb_per_tl = tl // hb                  # halo-block index stride per tile

    # Place x inside a zero slab so every tile window [j*TL, j*TL + TL + halo)
    # is in-bounds and exact; tile j reads its TL block plus one HB halo block.
    # TODO(synk): this host-side pad is one extra HBM pass over x; folding the
    # boundary handling into the kernel (element-offset blocks or a manual
    # halo DMA) would remove it.
    lp = n_lt * tl + hb
    pad_right = lp - padding - L
    assert pad_right >= 0
    x_p = jnp.pad(x.astype(jnp.float32),
                  ((0, 0), (0, 0), (padding, pad_right)))

    conv = pl.pallas_call(
        functools.partial(_conv_tile_kernel, kernel_size=K, dilation=dilation,
                          tile_len=tl),
        grid=(B, n_lt),
        in_specs=[
            pl.BlockSpec((c_out_pad, K * c_in), lambda b, j: (0, 0)),
            pl.BlockSpec((c_out_pad, 1), lambda b, j: (0, 0)),
            pl.BlockSpec((None, c_in, tl), lambda b, j: (b, 0, j)),
            pl.BlockSpec((None, c_in, hb),
                         lambda b, j: (b, 0, (j + 1) * hb_per_tl)),
        ],
        out_specs=pl.BlockSpec((None, c_out_pad, tl), lambda b, j: (b, 0, j)),
        out_shape=jax.ShapeDtypeStruct((B, c_out_pad, n_lt * tl), jnp.float32),
        compiler_params=pltpu.CompilerParams(
            dimension_semantics=("parallel", "parallel"),
            vmem_limit_bytes=32 * 1024 * 1024),
    )
    # TODO(synk): optionally cast x_p / w2d to bf16 (f32 accumulation) to halve
    # HBM traffic in the memory-bound regime (kept f32 to match reference).
    out_p = conv(w2d, b2, x_p, x_p)
    return out_p[:, :c_out, :l_out]


def _reference(x, mean, std, freq, phase, weight, bias, *, kernel_size,
               padding, dilation):
    kernel = _build_gabor_weight(mean, std, freq, phase, weight, kernel_size)
    out = jax.lax.conv_general_dilated(
        x, kernel, window_strides=(1,), padding=[(padding, padding)],
        rhs_dilation=(dilation,), dimension_numbers=('NCH', 'OIH', 'NCH'))
    return out + bias[None, :, None]


if __name__ == "__main__":
    B, C_IN, C_OUT, L, K, N = 2, 4, 6, 16, 5, 8
    PAD, DIL = 2, 1

    key = jax.random.PRNGKey(0)
    ks = jax.random.split(key, 7)
    x = jax.random.normal(ks[0], (B, C_IN, L), jnp.float32)
    mean = jax.random.normal(ks[1], (C_OUT, N), jnp.float32)
    std = jax.random.normal(ks[2], (C_OUT, N), jnp.float32)
    freq = jax.random.normal(ks[3], (C_OUT, N), jnp.float32)
    phase = jax.random.normal(ks[4], (C_OUT, N), jnp.float32)
    weight = jax.random.normal(ks[5], (C_OUT, C_IN, N), jnp.float32)
    bias = jax.random.normal(ks[6], (C_OUT,), jnp.float32)

    out = gabor_conv1d(x, mean, std, freq, phase, weight, bias,
                       kernel_size=K, stride=1, padding=PAD, dilation=DIL)
    out = jax.block_until_ready(out)

    ref = _reference(x, mean, std, freq, phase, weight, bias,
                     kernel_size=K, padding=PAD, dilation=DIL)
    if not jnp.allclose(out, ref, atol=1e-2, rtol=1e-2):
        raise AssertionError("Pallas GaborConv1d output mismatch vs reference")
    print("KERNEL_OK")
</pallas_src>

<mosaic_0001>
module attributes {stable_mosaic.version = 11 : i64} {
  func.func @_conv_tile_kernel(%arg0: i32, %arg1: i32, %arg2: memref<8x20xf32, #tpu.memory_space<vmem>>, %arg3: memref<8x1xf32, #tpu.memory_space<vmem>>, %arg4: memref<1x4x128xf32, #tpu.memory_space<vmem>>, %arg5: memref<1x4x128xf32, #tpu.memory_space<vmem>>, %arg6: memref<1x8x128xf32, #tpu.memory_space<vmem>>) attributes {dimension_semantics = [#tpu.dimension_semantics<parallel>, #tpu.dimension_semantics<parallel>], iteration_bounds = array<i64: 2, 1>, scalar_prefetch = 0 : i64, scratch_operands = 0 : i64, tpu.core_type = #tpu.core_type<tc>, window_params = [{pipeline_mode = #tpu.pipeline_mode<synchronous>, transform_indices = @transform_0, window_bounds = array<i64: 8, 20>}, {pipeline_mode = #tpu.pipeline_mode<synchronous>, transform_indices = @transform_1, window_bounds = array<i64: 8, 1>}, {transform_indices = @transform_2, window_bounds = array<i64: 1, 4, 128>}, {transform_indices = @transform_3, window_bounds = array<i64: 1, 4, 128>}, {transform_indices = @transform_4, window_bounds = array<i64: 1, 8, 128>}]} {
    %c0 = arith.constant 0 : index
    %c0_0 = arith.constant 0 : index
    %c0_1 = arith.constant 0 : index
    %0 = vector.load %arg4[%c0, %c0_0, %c0_1] : memref<1x4x128xf32, #tpu.memory_space<vmem>>, vector<1x4x128xf32>
    %1 = vector.shape_cast %0 : vector<1x4x128xf32> to vector<4x128xf32>
    %c0_2 = arith.constant 0 : index
    %c0_3 = arith.constant 0 : index
    %c0_4 = arith.constant 0 : index
    %2 = vector.load %arg5[%c0_2, %c0_3, %c0_4] : memref<1x4x128xf32, #tpu.memory_space<vmem>>, vector<1x4x128xf32>
    %3 = vector.shape_cast %2 : vector<1x4x128xf32> to vector<4x128xf32>
    %4 = tpu.concatenate %1, %3 in 1 : vector<4x128xf32>, vector<4x128xf32> -> vector<4x256xf32>
    %5 = vector.extract_strided_slice %4 {offsets = [0, 0], sizes = [4, 128], strides = [1, 1]} : vector<4x256xf32> to vector<4x128xf32>
    %c255_i32 = arith.constant 255 : i32
    %6 = tpu.dynamic_rotate %4 by %c255_i32 dim 1 : vector<4x256xf32>, i32 -> vector<4x256xf32>
    %7 = vector.extract_strided_slice %6 {offsets = [0, 0], sizes = [4, 128], strides = [1, 1]} : vector<4x256xf32> to vector<4x128xf32>
    %c254_i32 = arith.constant 254 : i32
    %8 = tpu.dynamic_rotate %4 by %c254_i32 dim 1 : vector<4x256xf32>, i32 -> vector<4x256xf32>
    %9 = vector.extract_strided_slice %8 {offsets = [0, 0], sizes = [4, 128], strides = [1, 1]} : vector<4x256xf32> to vector<4x128xf32>
    %c253_i32 = arith.constant 253 : i32
    %10 = tpu.dynamic_rotate %4 by %c253_i32 dim 1 : vector<4x256xf32>, i32 -> vector<4x256xf32>
    %11 = vector.extract_strided_slice %10 {offsets = [0, 0], sizes = [4, 128], strides = [1, 1]} : vector<4x256xf32> to vector<4x128xf32>
    %c252_i32 = arith.constant 252 : i32
    %12 = tpu.dynamic_rotate %4 by %c252_i32 dim 1 : vector<4x256xf32>, i32 -> vector<4x256xf32>
    %13 = vector.extract_strided_slice %12 {offsets = [0, 0], sizes = [4, 128], strides = [1, 1]} : vector<4x256xf32> to vector<4x128xf32>
    %14 = tpu.concatenate %5, %7, %9, %11, %13 in 0 : vector<4x128xf32>, vector<4x128xf32>, vector<4x128xf32>, vector<4x128xf32>, vector<4x128xf32> -> vector<20x128xf32>
    %c0_5 = arith.constant 0 : index
    %c0_6 = arith.constant 0 : index
    %15 = vector.load %arg2[%c0_5, %c0_6] : memref<8x20xf32, #tpu.memory_space<vmem>>, vector<8x20xf32>
    %cst = arith.constant dense<0.000000e+00> : vector<8x128xf32>
    %16 = tpu.matmul %15, %14, %cst {dimension_numbers = #tpu.dot_dimension_numbers<[1], [0], [0], [1], [0, 0, 1, 1], [], []>} : vector<8x20xf32>, vector<20x128xf32>, vector<8x128xf32> -> vector<8x128xf32>
    %c0_7 = arith.constant 0 : index
    %c0_8 = arith.constant 0 : index
    %17 = vector.load %arg3[%c0_7, %c0_8] : memref<8x1xf32, #tpu.memory_space<vmem>>, vector<8x1xf32>
    %18 = vector.broadcast %17 : vector<8x1xf32> to vector<8x128xf32>
    %19 = arith.addf %16, %18 : vector<8x128xf32>
    %c0_9 = arith.constant 0 : index
    %c0_10 = arith.constant 0 : index
    %c0_11 = arith.constant 0 : index
    %20 = vector.load %arg6[%c0_9, %c0_10, %c0_11] : memref<1x8x128xf32, #tpu.memory_space<vmem>>, vector<1x8x128xf32>
    %21 = vector.shape_cast %20 : vector<1x8x128xf32> to vector<8x128xf32>
    %22 = vector.shape_cast %19 : vector<8x128xf32> to vector<1x8x128xf32>
    tpu.vector_store %arg6[%c0_9, %c0_10, %c0_11], %22 {strides = array<i32>} : memref<1x8x128xf32, #tpu.memory_space<vmem>>, vector<1x8x128xf32>,
    return
  }
  func.func @transform_0(%arg0: i32, %arg1: i32) -> (i32, i32) {
    %c0_i32 = arith.constant 0 : i32
    %c0_i32_0 = arith.constant 0 : i32
    %c0_i32_1 = arith.constant 0 : i32
    return %c0_i32, %c0_i32_0 : i32, i32
  }
  func.func @transform_1(%arg0: i32, %arg1: i32) -> (i32, i32) {
    %c0_i32 = arith.constant 0 : i32
    %c0_i32_0 = arith.constant 0 : i32
    %c0_i32_1 = arith.constant 0 : i32
    return %c0_i32, %c0_i32_0 : i32, i32
  }
  func.func @transform_2(%arg0: i32, %arg1: i32) -> (i32, i32, i32) {
    %c0_i32 = arith.constant 0 : i32
    %c0_i32_0 = arith.constant 0 : i32
    return %arg0, %c0_i32, %arg1 : i32, i32, i32
  }
  func.func @transform_3(%arg0: i32, %arg1: i32) -> (i32, i32, i32) {
    %c1_i32 = arith.constant 1 : i32
    %0 = arith.addi %arg1, %c1_i32 : i32
    %c1_i32_0 = arith.constant 1 : i32
    %1 = arith.muli %0, %c1_i32_0 : i32
    %c0_i32 = arith.constant 0 : i32
    %c0_i32_1 = arith.constant 0 : i32
    return %arg0, %c0_i32, %1 : i32, i32, i32
  }
  func.func @transform_4(%arg0: i32, %arg1: i32) -> (i32, i32, i32) {
    %c0_i32 = arith.constant 0 : i32
    %c0_i32_0 = arith.constant 0 : i32
    return %arg0, %c0_i32, %arg1 : i32, i32, i32
  }
}

</mosaic_0001>

<llo_original>
// kernel: tpu_custom_call.1
$region0: #{tpu_custom_call.1}
  #allocation0 [shape = 'u32[]', space=smem, size = 0x4, offset = 0x4, fixed_abs, tag = 'smem constant byte address 0x4 - core index']
  #allocation1 [shape = 'u32[72,128]{1,0:T(1,128)}', space=vmem, size = 0x9000, scoped, tag = 'internal scratch']
  %s0 = inlined_call_operand.vmem [shape: f32[8,20], index: 0, kind: input, shape index: {}]
  %s1 = inlined_call_operand.vmem [shape: f32[8,1], index: 1, kind: input, shape index: {}]
  %s2 = inlined_call_operand.hbm [shape: f32[2,4,256], index: 2, kind: input, shape index: {}]
  %s3 = inlined_call_operand.hbm [shape: f32[2,4,256], index: 3, kind: input, shape index: {}]
  %s4 = inlined_call_operand.hbm [shape: f32[2,8,128], index: 4, kind: output, shape index: {}]
  %s5 = sld [smem:[#allocation0]]
  $region57: #{tpu_custom_call.1} parent=0
    _
  %s7 = ssub.s32 1, %s5
  %s8 = scalar_select 0, %s7, %s5
  $region1: #{tpu_custom_call.1} parent=0
    #allocation2 [shape = 'u8[4096]{0}', space=vmem, size = 0x1000, scoped, tag = 'input window, operand 2']
    #allocation3 [shape = 's32[2]{0}', space=sflag, size = 0x8, scoped, tag = 'scoped memory for tpu_custom_call.1']
    #allocation4 [shape = 's32[2]{0}', space=sflag, size = 0x8, scoped, tag = 'scoped memory for tpu_custom_call.1']
    #allocation5 [shape = 'u8[4096]{0}', space=vmem, size = 0x1000, scoped, tag = 'input window, operand 3']
    #allocation6 [shape = 's32[2]{0}', space=sflag, size = 0x8, scoped, tag = 'scoped memory for tpu_custom_call.1']
    #allocation7 [shape = 'u8[8192]{0}', space=vmem, size = 0x2000, scoped, tag = 'output window, operand 0']
    %9 = vsyncpa [#allocation3], 0
    %s10 = scalar_lea.sflag [#allocation3], 1
    %11 = vsyncpa %s10, 0
    %12 = vsyncpa [#allocation6], 0
    %s13 = scalar_lea.sflag [#allocation6], 1
    %14 = vsyncpa %s13, 0
    %15 = vsyncpa [#allocation4], 0
    %s16 = scalar_lea.sflag [#allocation4], 1
    %17 = vsyncpa %s16, 0
    loop: start=0, step=1, limit=4
    $region2: #{tpu_custom_call.1} parent=1 // loop_pre_header
      _
    $region3: #{tpu_custom_call.1} parent=1 // loop_header
      %s19 = sphi 0, %s23
      %p20 = scmp.ge.s32.totalorder %s19, 4
      %s26 = sphi 0, %s38
      %s27 = sphi 0, %s34
      %s28 = sphi 0, %s26
      %s29 = sphi 0, %s27
      %s30 = sphi 0, %s28
      %s31 = sphi 0, %s29
      %s39 = sphi 0, %s39
      %s41 = sphi 0, %s39
      %s42 = sphi 0, %s41
      %s56 = sphi 0, %s42
      %s60 = sphi 0, %s60
      %s62 = sphi 0, %s60
      %s63 = sphi 0, %s62
      %s77 = sphi 0, %s63
      %s85 = sphi 0, %s87
      %s88 = sphi 0, %s85
      %s89 = sphi 0, %s88
      %s105 = sphi 0, %s89
      %s115 = sphi 0, %s117
      %s118 = sphi 0, %s115
      %s119 = sphi 0, %s118
      %s135 = sphi 0, %s119
      %s143 = sphi 0, %s145
      %s146 = sphi 0, %s143
      %s147 = sphi 0, %s146
      %s163 = sphi 0, %s147
    $region4: #{tpu_custom_call.1} parent=1 // loop_header_branch
      %22 = sbr.rel (%p20) target = $region8
    $region5: #{tpu_custom_call.1} parent=1 // loop_body
      %s24 = ssub.s32 %s19, 1
      %s25 = ssub.s32 %s19, 2
      %s32 = sadd.s32 1, %s27
      %p33 = scmp.ge.s32.totalorder %s32, 1
      %s34 = scalar_select %p33, 0, %s32
      %s35 = sadd.s32 1, %s26
      %s36 = scalar_select %p33, %s35, %s26
      %p37 = scmp.ge.s32.totalorder %s36, 2
      %s38 = scalar_select %p37, 0, %s36
      %s40 = sadd.s32 %s39, 1
      %p43 = scmp.eq.s32.totalorder %s19, 1
      %p44 = scmp.ne.s32.totalorder %s39, %s41
      %p45 = scmp.eq.s32.totalorder %s19, 0
      %p46 = por %p44, %p45
      %p47 = scmp.ne.s32.totalorder %s39, %s41
      %p48 = scmp.eq.s32.totalorder %s24, 1
      %p49 = por %p47, %p48
      %p50 = scmp.ne.s32.totalorder %s41, %s42
      %p51 = scmp.eq.s32.totalorder %s24, 0
      %p52 = por %p50, %p51
      %p53 = scmp.ne.s32.totalorder %s41, %s42
      %p54 = scmp.eq.s32.totalorder %s25, 1
      %p55 = por %p53, %p54
      %p57 = scmp.ne.s32.totalorder %s42, %s56
      %p58 = scmp.eq.s32.totalorder %s25, 0
      %p59 = por %p57, %p58
      %s61 = sadd.s32 %s60, 1
      %p64 = scmp.eq.s32.totalorder %s19, 1
      %p65 = scmp.ne.s32.totalorder %s60, %s62
      %p66 = scmp.eq.s32.totalorder %s19, 0
      %p67 = por %p65, %p66
      %p68 = scmp.ne.s32.totalorder %s60, %s62
      %p69 = scmp.eq.s32.totalorder %s24, 1
      %p70 = por %p68, %p69
      %p71 = scmp.ne.s32.totalorder %s62, %s63
      %p72 = scmp.eq.s32.totalorder %s24, 0
      %p73 = por %p71, %p72
      %p74 = scmp.ne.s32.totalorder %s62, %s63
      %p75 = scmp.eq.s32.totalorder %s25, 1
      %p76 = por %p74, %p75
      %p78 = scmp.ne.s32.totalorder %s63, %s77
      %p79 = scmp.eq.s32.totalorder %s25, 0
      %p80 = por %p78, %p79
      %s81 = ssub.s32 %s26, %s38
      %s82 = ssub.s32 %s27, %s34
      %s83 = sor.u32 %s81, %s82
      %p84 = scmp.eq.s32.totalorder %s83, 0
      %s86 = sadd.s32 %s85, 1
      %s87 = scalar_select %p84, %s85, %s86
      %p90 = pneg %p84
      %p91 = scmp.eq.s32.totalorder %s19, 1
      %p92 = por %p90, %p91
      %p93 = scmp.ne.s32.totalorder %s85, %s88
      %p94 = scmp.eq.s32.totalorder %s19, 0
      %p95 = por %p93, %p94
      %p96 = scmp.ne.s32.totalorder %s85, %s88
      %p97 = scmp.eq.s32.totalorder %s24, 1
      %p98 = por %p96, %p97
      %p99 = scmp.ne.s32.totalorder %s88, %s89
      %p100 = scmp.eq.s32.totalorder %s24, 0
      %p101 = por %p99, %p100
      %p102 = scmp.ne.s32.totalorder %s88, %s89
      %p103 = scmp.eq.s32.totalorder %s25, 1
      %p104 = por %p102, %p103
      %p106 = scmp.ne.s32.totalorder %s89, %s105
      %p107 = scmp.eq.s32.totalorder %s25, 0
      %p108 = por %p106, %p107
      %s109 = sadd.s32 %s27, 1
      %s110 = sadd.s32 %s34, 1
      %s111 = ssub.s32 %s26, %s38
      %s112 = ssub.s32 %s109, %s110
      %s113 = sor.u32 %s111, %s112
      %p114 = scmp.eq.s32.totalorder %s113, 0
      %s116 = sadd.s32 %s115, 1
      %s117 = scalar_select %p114, %s115, %s116
      %p120 = pneg %p114
      %p121 = scmp.eq.s32.totalorder %s19, 1
      %p122 = por %p120, %p121
      %p123 = scmp.ne.s32.totalorder %s115, %s118
      %p124 = scmp.eq.s32.totalorder %s19, 0
      %p125 = por %p123, %p124
      %p126 = scmp.ne.s32.totalorder %s115, %s118
      %p127 = scmp.eq.s32.totalorder %s24, 1
      %p128 = por %p126, %p127
      %p129 = scmp.ne.s32.totalorder %s118, %s119
      %p130 = scmp.eq.s32.totalorder %s24, 0
      %p131 = por %p129, %p130
      %p132 = scmp.ne.s32.totalorder %s118, %s119
      %p133 = scmp.eq.s32.totalorder %s25, 1
      %p134 = por %p132, %p133
      %p136 = scmp.ne.s32.totalorder %s119, %s135
      %p137 = scmp.eq.s32.totalorder %s25, 0
      %p138 = por %p136, %p137
      %s139 = ssub.s32 %s26, %s38
      %s140 = ssub.s32 %s27, %s34
      %s141 = sor.u32 %s139, %s140
      %p142 = scmp.eq.s32.totalorder %s141, 0
      %s144 = sadd.s32 %s143, 1
      %s145 = scalar_select %p142, %s143, %s144
      %p148 = pneg %p142
      %p149 = scmp.eq.s32.totalorder %s19, 1
      %p150 = por %p148, %p149
      %p151 = scmp.ne.s32.totalorder %s143, %s146
      %p152 = scmp.eq.s32.totalorder %s19, 0
      %p153 = por %p151, %p152
      %p154 = scmp.ne.s32.totalorder %s143, %s146
      %p155 = scmp.eq.s32.totalorder %s24, 1
      %p156 = por %p154, %p155
      %p157 = scmp.ne.s32.totalorder %s146, %s147
      %p158 = scmp.eq.s32.totalorder %s24, 0
      %p159 = por %p157, %p158
      %p160 = scmp.ne.s32.totalorder %s146, %s147
      %p161 = scmp.eq.s32.totalorder %s25, 1
      %p162 = por %p160, %p161
      %p164 = scmp.ne.s32.totalorder %s147, %s163
      %p165 = scmp.eq.s32.totalorder %s25, 0
      %p166 = por %p164, %p165
      %p167 = scmp.le.s32.totalorder 1, %s19
      %p168 = scmp.lt.s32.totalorder %s19, 3
      %p169 = pnand %p167, %p168
      %p170 = pneg %p169
      // Predicated region
      $region9: #{tpu_custom_call.1} parent=5 // pred_check
        _
      $region10: #{tpu_custom_call.1} parent=5 // pred_check_branch
        %172 = sbr.rel (%p169) target = $region12
      $region11: #{tpu_custom_call.1} parent=5 // pred_region
        %s173 = ssub.s32 %s19, 1
        // Predicated region
        $region13: #{tpu_custom_call.1} parent=11 // pred_check
          %p174 = pneg %p52
        $region14: #{tpu_custom_call.1} parent=11 // pred_check_branch
          %176 = sbr.rel (%p174) target = $region16
        $region15: #{tpu_custom_call.1} parent=11 // pred_region
          _
        $region16: #{tpu_custom_call.1} parent=11 // pred_fallthru
          _
        // Predicated region
        $region17: #{tpu_custom_call.1} parent=11 // pred_check
          %p177 = pneg %p73
        $region18: #{tpu_custom_call.1} parent=11 // pred_check_branch
          %179 = sbr.rel (%p177) target = $region20
        $region19: #{tpu_custom_call.1} parent=11 // pred_region
          _
        $region20: #{tpu_custom_call.1} parent=11 // pred_fallthru
          _
      $region12: #{tpu_custom_call.1} parent=5 // pred_fallthru
        _
      %p180 = scmp.lt.s32.totalorder %s19, 2
      // Predicated region
      $region21: #{tpu_custom_call.1} parent=5 // pred_check
        %p181 = pneg %p180
      $region22: #{tpu_custom_call.1} parent=5 // pred_check_branch
        %183 = sbr.rel (%p181) target = $region24
      $region23: #{tpu_custom_call.1} parent=5 // pred_region
        // Predicated region
        $region25: #{tpu_custom_call.1} parent=23 // pred_check
          %p184 = pneg %p95
        $region26: #{tpu_custom_call.1} parent=23 // pred_check_branch
          %186 = sbr.rel (%p184) target = $region28
        $region27: #{tpu_custom_call.1} parent=23 // pred_region
          %s187 = sand.u32 %s85, 1
          %s188 = scalar_lea.sflag [#allocation3], %s187
          %s189 = sand.u32 %s85, 1
          %s190 = smul.addr %s189, 4
          %s191 = scalar_lea.vmem [#allocation2], %s190
          %193 = vsyncadd %s188, 0
          %s194 = smul.addr %s26, 2
          %s195 = sadd.s32 %s27, %s194
          %s196 = smul.addr %s195, 4
          %s197 = scalar_lea.hbm %s2, %s196
          %s199 = sshll.u32 %s197, 4
          %s200 = int_to_ptr.hbm [resolvable:$true] %s199
          %s201 = sshll.u32 %s191, 4
          %s202 = int_to_ptr.vmem [resolvable:$true] %s201
          %204 = dma.hbm_to_vmem [thread:$0]  %s200, 64, %s202, %s188
        $region28: #{tpu_custom_call.1} parent=23 // pred_fallthru
          _
        // Predicated region
        $region29: #{tpu_custom_call.1} parent=23 // pred_check
          %p205 = pneg %p125
        $region30: #{tpu_custom_call.1} parent=23 // pred_check_branch
          %207 = sbr.rel (%p205) target = $region32
        $region31: #{tpu_custom_call.1} parent=23 // pred_region
          %s208 = sand.u32 %s115, 1
          %s209 = scalar_lea.sflag [#allocation6], %s208
          %s210 = sand.u32 %s115, 1
          %s211 = smul.addr %s210, 4
          %s212 = scalar_lea.vmem [#allocation5], %s211
          %s213 = sadd.s32 %s27, 1
          %215 = vsyncadd %s209, 0
          %s216 = smul.addr %s26, 2
          %s217 = sadd.s32 %s213, %s216
          %s218 = smul.addr %s217, 4
          %s219 = scalar_lea.hbm %s3, %s218
          %s221 = sshll.u32 %s219, 4
          %s222 = int_to_ptr.hbm [resolvable:$true] %s221
          %s223 = sshll.u32 %s212, 4
          %s224 = int_to_ptr.vmem [resolvable:$true] %s223
          %226 = dma.hbm_to_vmem [thread:$0]  %s222, 64, %s224, %s209
        $region32: #{tpu_custom_call.1} parent=23 // pred_fallthru
          _
      $region24: #{tpu_custom_call.1} parent=5 // pred_fallthru
        _
      %p227 = scmp.le.s32.totalorder 1, %s19
      %p228 = scmp.lt.s32.totalorder %s19, 3
      %p229 = pnand %p227, %p228
      %p230 = pneg %p229
      // Predicated region
      $region33: #{tpu_custom_call.1} parent=5 // pred_check
        _
      $region34: #{tpu_custom_call.1} parent=5 // pred_check_branch
        %232 = sbr.rel (%p229) target = $region36
      $region35: #{tpu_custom_call.1} parent=5 // pred_region
        %s233 = ssub.s32 %s19, 1
        %s234 = sand.u32 %s88, 1
        %s235 = scalar_lea.sflag [#allocation3], %s234
        %s236 = sand.u32 %s88, 1
        %s237 = smul.addr %s236, 4
        %s238 = scalar_lea.vmem [#allocation2], %s237
        // Predicated region
        $region37: #{tpu_custom_call.1} parent=35 // pred_check
          %p239 = pneg %p101
        $region38: #{tpu_custom_call.1} parent=35 // pred_check_branch
          %241 = sbr.rel (%p239) target = $region40
        $region39: #{tpu_custom_call.1} parent=35 // pred_region
          %243 = dma.done %s235, 64
        $region40: #{tpu_custom_call.1} parent=35 // pred_fallthru
          _
        %s244 = sand.u32 %s118, 1
        %s245 = scalar_lea.sflag [#allocation6], %s244
        %s246 = sand.u32 %s118, 1
        %s247 = smul.addr %s246, 4
        %s248 = scalar_lea.vmem [#allocation5], %s247
        // Predicated region
        $region41: #{tpu_custom_call.1} parent=35 // pred_check
          %p249 = pneg %p131
        $region42: #{tpu_custom_call.1} parent=35 // pred_check_branch
          %251 = sbr.rel (%p249) target = $region44
        $region43: #{tpu_custom_call.1} parent=35 // pred_region
          %253 = dma.done %s245, 64
        $region44: #{tpu_custom_call.1} parent=35 // pred_fallthru
          _
        %p254 = pneg %p52
        %p255 = pneg %p49
        %p256 = pneg %p73
        %p257 = pneg %p70
        %s258 = sand.u32 %s88, 1
        %s259 = scalar_lea.sflag [#allocation3], %s258
        %s260 = sand.u32 %s88, 1
        %s261 = smul.addr %s260, 4
        %s262 = scalar_lea.vmem [#allocation2], %s261
        %p263 = pneg %p101
        %p264 = pneg %p98
        %s265 = sand.u32 %s118, 1
        %s266 = scalar_lea.sflag [#allocation6], %s265
        %s267 = sand.u32 %s118, 1
        %s268 = smul.addr %s267, 4
        %s269 = scalar_lea.vmem [#allocation5], %s268
        %p270 = pneg %p131
        %p271 = pneg %p128
        %p272 = pneg %p159
        %p273 = pneg %p156
        %s274 = sand.u32 %s146, 1
        %s275 = scalar_lea.sflag [#allocation4], %s274
        %s276 = sand.u32 %s146, 1
        %s277 = smul.addr %s276, 8
        %s278 = scalar_lea.vmem [#allocation7], %s277
        %s279 = sadd.s32 %s29, 1
        %v280 = vld [vmem:[%s238] sm:$0xf]
        %v281 = vld [vmem:[%s248] sm:$0xf]
        %282 = vrot.lane.b32.xlu0 %v280, 127
        %v283 = vpop.permute.xlu0 %282
        %284 = vrot.lane.b32.xlu0 %v281, 127
        %v285 = vpop.permute.xlu0 %284
        %v286 = vlaneseq
        %v287 = vand.u32 %v286, 127
        %vm288 = vcmp.lt.s32.totalorder %v287, 127
        %v289 = vsel %vm288, %v283, %v285
        %290 = vrot.lane.b32.xlu0 %v280, 126
        %v291 = vpop.permute.xlu0 %290
        %292 = vrot.lane.b32.xlu0 %v281, 126
        %v293 = vpop.permute.xlu0 %292
        %vm294 = vcmp.lt.s32.totalorder %v287, 126
        %v295 = vsel %vm294, %v291, %v293
        %296 = vrot.lane.b32.xlu0 %v280, 125
        %v297 = vpop.permute.xlu0 %296
        %298 = vrot.lane.b32.xlu0 %v281, 125
        %v299 = vpop.permute.xlu0 %298
        %vm300 = vcmp.lt.s32.totalorder %v287, 125
        %v301 = vsel %vm300, %v297, %v299
        %302 = vrot.lane.b32.xlu0 %v280, 124
        %v303 = vpop.permute.xlu0 %302
        %304 = vrot.lane.b32.xlu0 %v281, 124
        %v305 = vpop.permute.xlu0 %304
        %vm306 = vcmp.lt.s32.totalorder %v287, 124
        %v307 = vsel %vm306, %v303, %v305
        %v309 = vrot.slane %v289, 4
        %v312 = vrot.slane %v301, 4
        %vm314 = vcmask 1043456
        %v315 = vsel %vm314, %v280, %v309
        %v316 = vsel %vm314, %v295, %v312
        %v317 = vld [vmem:[%s0] sm:$0xff]
        %v318 = vld [vmem:[%s1] sm:$0xff]
        %320 = vset.pattern.permute.xlu0 0
        %321 = vperm.xlu0 %320, %v318
        %v322 = vpop.permute.xlu0 %321
        %vm324 = vcmask 162816
        %v326 = vsel %vm324, %v317, 0
        %v329 = vsel %vm314, %v307, 0
        %331 = vmatpush.msra.mxu0 0.0
        %332 = vmatpush.msra.mxu0 0.0
        %333 = vmatpush.msra.mxu0 0.0
        %334 = vmatpush.msra.mxu0 0.0
        %335 = vmatpush.msra.mxu0 0.0
        %336 = vmatpush.msra.mxu0 0.0
        %337 = vmatpush.msra.mxu0 0.0
        %338 = vmatpush.msra.mxu0 0.0
        %339 = vmatpush.msra.mxu0 0.0
        %340 = vmatpush.msra.mxu0 0.0
        %341 = vmatpush.msra.mxu0 0.0
        %342 = vmatpush.msra.mxu0 0.0
        %343 = vmatpush.msra.mxu0 0.0
        %344 = vmatpush.msra.mxu0 %v329
        %345 = vmatpush.msra.mxu0 %v316
        %346 = vmatpush.msra.mxu0 %v315
        %347 = vmatmul.f32.gmra.mxu0 %v326
        %v348 = vpop.f32.mrf.mxu0
        %v349 = vadd.f32 %v322, %v348
        %350 = vdwg.mxu0
        %351 = vst [vmem:[%s278] sm:$0xff] %v349
        %s352 = sand.u32 %s146, 1
        %s353 = scalar_lea.sflag [#allocation4], %s352
        %s354 = sand.u32 %s146, 1
        %s355 = smul.addr %s354, 8
        %s356 = scalar_lea.vmem [#allocation7], %s355
        // Predicated region
        $region45: #{tpu_custom_call.1} parent=35 // pred_check
          %p357 = pneg %p156
        $region46: #{tpu_custom_call.1} parent=35 // pred_check_branch
          %359 = sbr.rel (%p357) target = $region48
        $region47: #{tpu_custom_call.1} parent=35 // pred_region
          %361 = vsyncadd %s353, 0
          %s362 = sadd.s32 %s29, %s28
          %s363 = smul.addr %s362, 8
          %s364 = scalar_lea.hbm %s4, %s363
          %s366 = sshll.u32 %s356, 4
          %s367 = int_to_ptr.vmem [resolvable:$true] %s366
          %s368 = sshll.u32 %s364, 4
          %s369 = int_to_ptr.hbm [resolvable:$true] %s368
          %371 = dma.vmem_to_hbm [thread:$0]  %s367, 128, %s369, %s353
        $region48: #{tpu_custom_call.1} parent=35 // pred_fallthru
          _
      $region36: #{tpu_custom_call.1} parent=5 // pred_fallthru
        _
      %p372 = scmp.le.s32.totalorder 2, %s19
      // Predicated region
      $region49: #{tpu_custom_call.1} parent=5 // pred_check
        %p373 = pneg %p372
      $region50: #{tpu_custom_call.1} parent=5 // pred_check_branch
        %375 = sbr.rel (%p373) target = $region52
      $region51: #{tpu_custom_call.1} parent=5 // pred_region
        %s376 = ssub.s32 %s19, 2
        // Predicated region
        $region53: #{tpu_custom_call.1} parent=51 // pred_check
          %p377 = pneg %p162
        $region54: #{tpu_custom_call.1} parent=51 // pred_check_branch
          %379 = sbr.rel (%p377) target = $region56
        $region55: #{tpu_custom_call.1} parent=51 // pred_region
          %s380 = sand.u32 %s147, 1
          %s381 = scalar_lea.sflag [#allocation4], %s380
          %s382 = sand.u32 %s147, 1
          %s383 = smul.addr %s382, 8
          %s384 = scalar_lea.vmem [#allocation7], %s383
          %386 = dma.done %s381, 128
        $region56: #{tpu_custom_call.1} parent=51 // pred_fallthru
          _
      $region52: #{tpu_custom_call.1} parent=5 // pred_fallthru
        _
    $region6: #{tpu_custom_call.1} parent=1 // loop_footer
      %s23 = sadd.s32 1, %s19
    $region7: #{tpu_custom_call.1} parent=1 // loop_footer_branch
      %18 = sbr.rel target = $region3
    $region8: #{tpu_custom_call.1} parent=1 // loop_exit
      _
    %387 = vsyncpa [#allocation3], 1
    %s388 = scalar_lea.sflag [#allocation3], 1
    %389 = vsyncpa %s388, 1
    %390 = vsyncpa [#allocation6], 1
    %s391 = scalar_lea.sflag [#allocation6], 1
    %392 = vsyncpa %s391, 1
    %393 = vsyncpa [#allocation4], 1
    %s394 = scalar_lea.sflag [#allocation4], 1
    %395 = vsyncpa %s394, 1

</llo_original>
